<compile_context>
chip_gen: v5e
topology: v5e:2x2
jax: 0.10.0
libtpu: 0.0.40
codegen_flags: <defaults>
</compile_context>

<pallas_src>
import math

import jax
import jax.numpy as jnp
from jax import lax
from jax.experimental import pallas as pl
from jax.experimental.pallas import tpu as pltpu


# ---------------------------------------------------------------------------
# Pallas kernel: fused channel concat (the SkipBlock forward op)
# ---------------------------------------------------------------------------
def _skip_concat_kernel(a_ref, b_ref, o_ref):
    # a_ref: (TB, C_main, H*W)   main(x) tile
    # b_ref: (TB, C_skip, H*W)   skip(x) tile
    # o_ref: (TB, C_main+C_skip, H*W)
    #
    # Both stores are full lane width (lane axis = H*W), i.e. unmasked along
    # lanes; the split is only along the sublane (channel) axis.
    cm = a_ref.shape[1]
    o_ref[:, :cm, :] = a_ref[...]
    o_ref[:, cm:, :] = b_ref[...]


def _pick_batch_tile(n, row_bytes, target_block_bytes=2 << 20):
    """Batch tile: bounded VMEM (~2 MiB output block) and >=2 grid steps when
    possible so the BlockSpec pipeline actually double-buffers."""
    tb = max(1, min(n, target_block_bytes // max(1, row_bytes)))
    if n > 1 and tb >= n:
        tb = -(-n // 2)  # ceil(n/2)
    return int(tb)


def skip_block_concat(main_out, skip_out):
    """torch.cat([main_out, skip_out], dim=1) for NCHW tensors, via Pallas."""
    assert main_out.ndim == 4 and skip_out.ndim == 4
    n, cm, h, w = main_out.shape
    n2, cs, h2, w2 = skip_out.shape
    assert (n, h, w) == (n2, h2, w2), "main/skip must agree on N, H, W"
    assert main_out.dtype == skip_out.dtype
    ct = cm + cs
    hw = h * w

    # Lane-dense layout: last (lane) axis is the flattened spatial extent.
    a = main_out.reshape(n, cm, hw)
    b = skip_out.reshape(n, cs, hw)

    row_bytes = ct * hw * a.dtype.itemsize
    tb = _pick_batch_tile(n, row_bytes)
    n_blocks = pl.cdiv(n, tb)
    n_pad = n_blocks * tb
    if n_pad != n:  # ragged last tile -> zero-pad batch, slice result after
        pad = ((0, n_pad - n), (0, 0), (0, 0))
        a = jnp.pad(a, pad)
        b = jnp.pad(b, pad)

    out = pl.pallas_call(
        _skip_concat_kernel,
        out_shape=jax.ShapeDtypeStruct((n_pad, ct, hw), a.dtype),
        grid=(n_blocks,),
        in_specs=[
            pl.BlockSpec((tb, cm, hw), lambda i: (i, 0, 0)),
            pl.BlockSpec((tb, cs, hw), lambda i: (i, 0, 0)),
        ],
        out_specs=pl.BlockSpec((tb, ct, hw), lambda i: (i, 0, 0)),
        compiler_params=pltpu.CompilerParams(
            dimension_semantics=("parallel",),  # shard batch tiles across TCs (v7x)
        ),
    )(a, b)

    return out[:n].reshape(n, ct, h, w)


# ---------------------------------------------------------------------------
# SkipBlock module analogue
# ---------------------------------------------------------------------------
class SkipBlock:
    """JAX/Pallas analogue of the PyTorch SkipBlock.

    forward(x) = concat([main(x), skip(x)], axis=1)  (channel dim, NCHW)
    """

    # TODO(synk): arbitrary nn.Sequential `main`/`skip` submodules have no
    # generic Pallas translation; they run as user-supplied JAX callables and
    # only SkipBlock's own op (the channel concat) is the Pallas kernel.
    def __init__(self, main, skip=None):
        self.main = main
        self.skip = skip if skip is not None else (lambda x: x)

    def __call__(self, x):
        return skip_block_concat(self.main(x), self.skip(x))


# ---------------------------------------------------------------------------
# Demo: main = Conv2d(4->8, 3x3, padding=1) + ReLU, skip = Identity
# ---------------------------------------------------------------------------
def make_demo_main(key, c_in, c_out):
    w = jax.random.normal(key, (c_out, c_in, 3, 3), dtype=jnp.float32)
    w = w * (1.0 / math.sqrt(c_in * 9))

    def main_fn(x):
        y = lax.conv_general_dilated(
            x, w, window_strides=(1, 1), padding="SAME",
            dimension_numbers=("NCHW", "OIHW", "NCHW"))
        return jax.nn.relu(y)

    return main_fn


if __name__ == "__main__":
    key = jax.random.PRNGKey(0)
    k_x, k_w = jax.random.split(key)

    n, c_in, h, w = 2, 4, 16, 16
    c_main = 8

    x = jax.random.normal(k_x, (n, c_in, h, w), dtype=jnp.float32)
    main_fn = make_demo_main(k_w, c_in, c_main)

    block = SkipBlock(main_fn)            # skip defaults to Identity
    out = jax.block_until_ready(block(x))

    # Pure-JAX reference of SkipBlock.forward
    ref = jnp.concatenate([main_fn(x), x], axis=1)

    assert out.shape == (n, c_main + c_in, h, w)
    assert jnp.allclose(out, ref, atol=1e-5, rtol=1e-5), "mismatch vs reference"

    print("KERNEL_OK")
</pallas_src>

<mosaic_0001>
module attributes {stable_mosaic.version = 11 : i64} {
  func.func @_skip_concat_kernel(%arg0: i32, %arg1: memref<1x8x256xf32, #tpu.memory_space<vmem>>, %arg2: memref<1x4x256xf32, #tpu.memory_space<vmem>>, %arg3: memref<1x12x256xf32, #tpu.memory_space<vmem>>) attributes {dimension_semantics = [#tpu.dimension_semantics<parallel>], iteration_bounds = array<i64: 2>, scalar_prefetch = 0 : i64, scratch_operands = 0 : i64, tpu.core_type = #tpu.core_type<tc>, window_params = [{transform_indices = @transform_0, window_bounds = array<i64: 1, 8, 256>}, {transform_indices = @transform_1, window_bounds = array<i64: 1, 4, 256>}, {transform_indices = @transform_2, window_bounds = array<i64: 1, 12, 256>}]} {
    %c0 = arith.constant 0 : index
    %c0_0 = arith.constant 0 : index
    %c0_1 = arith.constant 0 : index
    %0 = vector.load %arg1[%c0, %c0_0, %c0_1] : memref<1x8x256xf32, #tpu.memory_space<vmem>>, vector<1x8x256xf32>
    %c0_2 = arith.constant 0 : index
    %c0_3 = arith.constant 0 : index
    %c0_4 = arith.constant 0 : index
    %1 = vector.load %arg3[%c0_2, %c0_3, %c0_4] : memref<1x12x256xf32, #tpu.memory_space<vmem>>, vector<1x8x256xf32>
    tpu.vector_store %arg3[%c0_2, %c0_3, %c0_4], %0 {strides = array<i32>} : memref<1x12x256xf32, #tpu.memory_space<vmem>>, vector<1x8x256xf32>,
    %c0_5 = arith.constant 0 : index
    %c0_6 = arith.constant 0 : index
    %c0_7 = arith.constant 0 : index
    %2 = vector.load %arg2[%c0_5, %c0_6, %c0_7] : memref<1x4x256xf32, #tpu.memory_space<vmem>>, vector<1x4x256xf32>
    %c0_8 = arith.constant 0 : index
    %c8 = arith.constant 8 : index
    %c0_9 = arith.constant 0 : index
    %3 = vector.load %arg3[%c0_8, %c8, %c0_9] : memref<1x12x256xf32, #tpu.memory_space<vmem>>, vector<1x4x256xf32>
    tpu.vector_store %arg3[%c0_8, %c8, %c0_9], %2 {strides = array<i32>} : memref<1x12x256xf32, #tpu.memory_space<vmem>>, vector<1x4x256xf32>,
    return
  }
  func.func @transform_0(%arg0: i32) -> (i32, i32, i32) {
    %c0_i32 = arith.constant 0 : i32
    %c0_i32_0 = arith.constant 0 : i32
    %c0_i32_1 = arith.constant 0 : i32
    return %arg0, %c0_i32, %c0_i32_0 : i32, i32, i32
  }
  func.func @transform_1(%arg0: i32) -> (i32, i32, i32) {
    %c0_i32 = arith.constant 0 : i32
    %c0_i32_0 = arith.constant 0 : i32
    %c0_i32_1 = arith.constant 0 : i32
    return %arg0, %c0_i32, %c0_i32_0 : i32, i32, i32
  }
  func.func @transform_2(%arg0: i32) -> (i32, i32, i32) {
    %c0_i32 = arith.constant 0 : i32
    %c0_i32_0 = arith.constant 0 : i32
    %c0_i32_1 = arith.constant 0 : i32
    return %arg0, %c0_i32, %c0_i32_0 : i32, i32, i32
  }
}

</mosaic_0001>

<llo_original>
// kernel: tpu_custom_call.1
$region0: #{tpu_custom_call.1}
  #allocation0 [shape = 'u32[]', space=smem, size = 0x4, offset = 0x4, fixed_abs, tag = 'smem constant byte address 0x4 - core index']
  #allocation1 [shape = 'u32[72,128]{1,0:T(1,128)}', space=vmem, size = 0x9000, scoped, tag = 'internal scratch']
  %s0 = inlined_call_operand.hbm [shape: f32[2,8,256], index: 0, kind: input, shape index: {}]
  %s1 = inlined_call_operand.hbm [shape: f32[2,4,256], index: 1, kind: input, shape index: {}]
  %s2 = inlined_call_operand.vmem [shape: f32[2,12,256], index: 2, kind: output, shape index: {}]
  %s3 = sld [smem:[#allocation0]]
  $region49: #{tpu_custom_call.1} parent=0
    _
  %s5 = ssub.s32 1, %s3
  %s6 = scalar_select 0, %s5, %s3
  $region1: #{tpu_custom_call.1} parent=0
    #allocation2 [shape = 'u8[16384]{0}', space=vmem, size = 0x4000, scoped, tag = 'input window, operand 0']
    #allocation3 [shape = 's32[2]{0}', space=sflag, size = 0x8, scoped, tag = 'scoped memory for tpu_custom_call.1']
    #allocation4 [shape = 'u8[8192]{0}', space=vmem, size = 0x2000, scoped, tag = 'input window, operand 1']
    #allocation5 [shape = 's32[2]{0}', space=sflag, size = 0x8, scoped, tag = 'scoped memory for tpu_custom_call.1']
    %7 = vsyncpa [#allocation3], 0
    %s8 = scalar_lea.sflag [#allocation3], 1
    %9 = vsyncpa %s8, 0
    %10 = vsyncpa [#allocation5], 0
    %s11 = scalar_lea.sflag [#allocation5], 1
    %12 = vsyncpa %s11, 0
    loop: start=0, step=1, limit=4
    $region2: #{tpu_custom_call.1} parent=1 // loop_pre_header
      _
    $region3: #{tpu_custom_call.1} parent=1 // loop_header
      %s14 = sphi 0, %s18
      %p15 = scmp.ge.s32.totalorder %s14, 4
      %s24 = sphi 0, %s26
      %s27 = sphi 0, %s24
      %s28 = sphi 0, %s27
      %s44 = sphi 0, %s28
      %s50 = sphi 0, %s52
      %s53 = sphi 0, %s50
      %s54 = sphi 0, %s53
      %s70 = sphi 0, %s54
      %s76 = sphi 0, %s78
      %s79 = sphi 0, %s76
      %s80 = sphi 0, %s79
      %s96 = sphi 0, %s80
    $region4: #{tpu_custom_call.1} parent=1 // loop_header_branch
      %17 = sbr.rel (%p15) target = $region8
    $region5: #{tpu_custom_call.1} parent=1 // loop_body
      %s19 = ssub.s32 %s14, 1
      %s20 = ssub.s32 %s14, 2
      %s21 = sadd.s32 %s14, 1
      %s22 = ssub.s32 %s14, %s21
      %p23 = scmp.eq.s32.totalorder %s22, 0
      %s25 = sadd.s32 %s24, 1
      %s26 = scalar_select %p23, %s24, %s25
      %p29 = pneg %p23
      %p30 = scmp.eq.s32.totalorder %s14, 1
      %p31 = por %p29, %p30
      %p32 = scmp.ne.s32.totalorder %s24, %s27
      %p33 = scmp.eq.s32.totalorder %s14, 0
      %p34 = por %p32, %p33
      %p35 = scmp.ne.s32.totalorder %s24, %s27
      %p36 = scmp.eq.s32.totalorder %s19, 1
      %p37 = por %p35, %p36
      %p38 = scmp.ne.s32.totalorder %s27, %s28
      %p39 = scmp.eq.s32.totalorder %s19, 0
      %p40 = por %p38, %p39
      %p41 = scmp.ne.s32.totalorder %s27, %s28
      %p42 = scmp.eq.s32.totalorder %s20, 1
      %p43 = por %p41, %p42
      %p45 = scmp.ne.s32.totalorder %s28, %s44
      %p46 = scmp.eq.s32.totalorder %s20, 0
      %p47 = por %p45, %p46
      %s48 = ssub.s32 %s14, %s21
      %p49 = scmp.eq.s32.totalorder %s48, 0
      %s51 = sadd.s32 %s50, 1
      %s52 = scalar_select %p49, %s50, %s51
      %p55 = pneg %p49
      %p56 = scmp.eq.s32.totalorder %s14, 1
      %p57 = por %p55, %p56
      %p58 = scmp.ne.s32.totalorder %s50, %s53
      %p59 = scmp.eq.s32.totalorder %s14, 0
      %p60 = por %p58, %p59
      %p61 = scmp.ne.s32.totalorder %s50, %s53
      %p62 = scmp.eq.s32.totalorder %s19, 1
      %p63 = por %p61, %p62
      %p64 = scmp.ne.s32.totalorder %s53, %s54
      %p65 = scmp.eq.s32.totalorder %s19, 0
      %p66 = por %p64, %p65
      %p67 = scmp.ne.s32.totalorder %s53, %s54
      %p68 = scmp.eq.s32.totalorder %s20, 1
      %p69 = por %p67, %p68
      %p71 = scmp.ne.s32.totalorder %s54, %s70
      %p72 = scmp.eq.s32.totalorder %s20, 0
      %p73 = por %p71, %p72
      %s74 = ssub.s32 %s14, %s21
      %p75 = scmp.eq.s32.totalorder %s74, 0
      %s77 = sadd.s32 %s76, 1
      %s78 = scalar_select %p75, %s76, %s77
      %p81 = pneg %p75
      %p82 = scmp.eq.s32.totalorder %s14, 1
      %p83 = por %p81, %p82
      %p84 = scmp.ne.s32.totalorder %s76, %s79
      %p85 = scmp.eq.s32.totalorder %s14, 0
      %p86 = por %p84, %p85
      %p87 = scmp.ne.s32.totalorder %s76, %s79
      %p88 = scmp.eq.s32.totalorder %s19, 1
      %p89 = por %p87, %p88
      %p90 = scmp.ne.s32.totalorder %s79, %s80
      %p91 = scmp.eq.s32.totalorder %s19, 0
      %p92 = por %p90, %p91
      %p93 = scmp.ne.s32.totalorder %s79, %s80
      %p94 = scmp.eq.s32.totalorder %s20, 1
      %p95 = por %p93, %p94
      %p97 = scmp.ne.s32.totalorder %s80, %s96
      %p98 = scmp.eq.s32.totalorder %s20, 0
      %p99 = por %p97, %p98
      %p100 = scmp.le.s32.totalorder 1, %s14
      %p101 = scmp.lt.s32.totalorder %s14, 3
      %p102 = pnand %p100, %p101
      %p103 = pneg %p102
      // Predicated region
      $region9: #{tpu_custom_call.1} parent=5 // pred_check
        _
      $region10: #{tpu_custom_call.1} parent=5 // pred_check_branch
        %105 = sbr.rel (%p102) target = $region12
      $region11: #{tpu_custom_call.1} parent=5 // pred_region
        %s106 = ssub.s32 %s14, 1
      $region12: #{tpu_custom_call.1} parent=5 // pred_fallthru
        _
      %p107 = scmp.lt.s32.totalorder %s14, 2
      // Predicated region
      $region13: #{tpu_custom_call.1} parent=5 // pred_check
        %p108 = pneg %p107
      $region14: #{tpu_custom_call.1} parent=5 // pred_check_branch
        %110 = sbr.rel (%p108) target = $region16
      $region15: #{tpu_custom_call.1} parent=5 // pred_region
        // Predicated region
        $region17: #{tpu_custom_call.1} parent=15 // pred_check
          %p111 = pneg %p34
        $region18: #{tpu_custom_call.1} parent=15 // pred_check_branch
          %113 = sbr.rel (%p111) target = $region20
        $region19: #{tpu_custom_call.1} parent=15 // pred_region
          %s114 = sand.u32 %s24, 1
          %s115 = scalar_lea.sflag [#allocation3], %s114
          %s116 = sand.u32 %s24, 1
          %s117 = smul.addr %s116, 16
          %s118 = scalar_lea.vmem [#allocation2], %s117
          %120 = vsyncadd %s115, 0
          %s121 = smul.addr %s14, 2
          %s122 = smul.addr %s121, 8
          %s123 = scalar_lea.hbm %s0, %s122
          %s125 = sshll.u32 %s123, 4
          %s126 = int_to_ptr.hbm [resolvable:$true] %s125
          %s127 = sshll.u32 %s118, 4
          %s128 = int_to_ptr.vmem [resolvable:$true] %s127
          %130 = dma.hbm_to_vmem [thread:$0]  %s126, 256, %s128, %s115
        $region20: #{tpu_custom_call.1} parent=15 // pred_fallthru
          _
        // Predicated region
        $region21: #{tpu_custom_call.1} parent=15 // pred_check
          %p131 = pneg %p60
        $region22: #{tpu_custom_call.1} parent=15 // pred_check_branch
          %133 = sbr.rel (%p131) target = $region24
        $region23: #{tpu_custom_call.1} parent=15 // pred_region
          %s134 = sand.u32 %s50, 1
          %s135 = scalar_lea.sflag [#allocation5], %s134
          %s136 = sand.u32 %s50, 1
          %s137 = smul.addr %s136, 8
          %s138 = scalar_lea.vmem [#allocation4], %s137
          %140 = vsyncadd %s135, 0
          %s141 = smul.addr %s14, 2
          %s142 = smul.addr %s141, 4
          %s143 = scalar_lea.hbm %s1, %s142
          %s145 = sshll.u32 %s143, 4
          %s146 = int_to_ptr.hbm [resolvable:$true] %s145
          %s147 = sshll.u32 %s138, 4
          %s148 = int_to_ptr.vmem [resolvable:$true] %s147
          %150 = dma.hbm_to_vmem [thread:$0]  %s146, 128, %s148, %s135
        $region24: #{tpu_custom_call.1} parent=15 // pred_fallthru
          _
      $region16: #{tpu_custom_call.1} parent=5 // pred_fallthru
        _
      %p151 = scmp.le.s32.totalorder 1, %s14
      %p152 = scmp.lt.s32.totalorder %s14, 3
      %p153 = pnand %p151, %p152
      %p154 = pneg %p153
      // Predicated region
      $region25: #{tpu_custom_call.1} parent=5 // pred_check
        _
      $region26: #{tpu_custom_call.1} parent=5 // pred_check_branch
        %156 = sbr.rel (%p153) target = $region28
      $region27: #{tpu_custom_call.1} parent=5 // pred_region
        %s157 = ssub.s32 %s14, 1
        %s158 = sand.u32 %s27, 1
        %s159 = scalar_lea.sflag [#allocation3], %s158
        %s160 = sand.u32 %s27, 1
        %s161 = smul.addr %s160, 16
        %s162 = scalar_lea.vmem [#allocation2], %s161
        // Predicated region
        $region29: #{tpu_custom_call.1} parent=27 // pred_check
          %p163 = pneg %p40
        $region30: #{tpu_custom_call.1} parent=27 // pred_check_branch
          %165 = sbr.rel (%p163) target = $region32
        $region31: #{tpu_custom_call.1} parent=27 // pred_region
          %167 = dma.done %s159, 256
        $region32: #{tpu_custom_call.1} parent=27 // pred_fallthru
          _
        %s168 = sand.u32 %s53, 1
        %s169 = scalar_lea.sflag [#allocation5], %s168
        %s170 = sand.u32 %s53, 1
        %s171 = smul.addr %s170, 8
        %s172 = scalar_lea.vmem [#allocation4], %s171
        // Predicated region
        $region33: #{tpu_custom_call.1} parent=27 // pred_check
          %p173 = pneg %p66
        $region34: #{tpu_custom_call.1} parent=27 // pred_check_branch
          %175 = sbr.rel (%p173) target = $region36
        $region35: #{tpu_custom_call.1} parent=27 // pred_region
          %177 = dma.done %s169, 128
        $region36: #{tpu_custom_call.1} parent=27 // pred_fallthru
          _
        %s178 = sand.u32 %s27, 1
        %s179 = scalar_lea.sflag [#allocation3], %s178
        %s180 = sand.u32 %s27, 1
        %s181 = smul.addr %s180, 16
        %s182 = scalar_lea.vmem [#allocation2], %s181
        %p183 = pneg %p40
        %p184 = pneg %p37
        %s185 = sand.u32 %s53, 1
        %s186 = scalar_lea.sflag [#allocation5], %s185
        %s187 = sand.u32 %s53, 1
        %s188 = smul.addr %s187, 8
        %s189 = scalar_lea.vmem [#allocation4], %s188
        %p190 = pneg %p66
        %p191 = pneg %p63
        %p192 = pneg %p92
        %p193 = pneg %p89
        %p194 = scmp.lt.s32.totalorder %s19, 1
        %s195 = scalar_select %p194, %s19, 1
        %s196 = smul.addr %s195, 4
        %s197 = smul.addr %s196, 8
        %s198 = scalar_lea.vmem %s2, %s197
        %p199 = scmp.lt.s32.totalorder %s19, 1
        %s200 = scalar_select %p199, %s19, 1
        %s201 = smul.addr %s200, 4
        %s202 = smul.addr %s201, 8
        %s203 = scalar_lea.vmem %s2, %s202
        %v204 = vld [vmem:[%s162] sm:$0xff]
        %v205 = vld [vmem:[%s162 + $0x8] sm:$0xff]
        %206 = vst [vmem:[%s203] sm:$0xff] %v204
        %207 = vst [vmem:[%s203 + $0x8] sm:$0xff] %v205
        %v208 = vld [vmem:[%s172] sm:$0xff]
        %210 = vst [vmem:[#allocation1] ss:$2 sm:$0xff] %v208
        %v211 = vld.sshfl [vmem:[#allocation1] sm:$0xff pattern:$0x75316420]
        %v212 = vld.sshfl [vmem:[#allocation1 + $0x8] sm:$0xff pattern:$0x75316420]
        %215 = vst [vmem:[%s203 + $0x10] sm:$0xf] %v211
        %216 = vst [vmem:[%s203 + $0x18] sm:$0xf] %v212
        %p217 = scmp.lt.s32.totalorder %s19, 1
        %s218 = scalar_select %p217, %s19, 1
        %s219 = smul.addr %s218, 4
        %s220 = smul.addr %s219, 8
        %s221 = scalar_lea.vmem %s2, %s220
        // Predicated region
        $region37: #{tpu_custom_call.1} parent=27 // pred_check
          %p222 = pneg %p89
        $region38: #{tpu_custom_call.1} parent=27 // pred_check_branch
          %224 = sbr.rel (%p222) target = $region40
        $region39: #{tpu_custom_call.1} parent=27 // pred_region
          _
        $region40: #{tpu_custom_call.1} parent=27 // pred_fallthru
          _
      $region28: #{tpu_custom_call.1} parent=5 // pred_fallthru
        _
      %p225 = scmp.le.s32.totalorder 2, %s14
      // Predicated region
      $region41: #{tpu_custom_call.1} parent=5 // pred_check
        %p226 = pneg %p225
      $region42: #{tpu_custom_call.1} parent=5 // pred_check_branch
        %228 = sbr.rel (%p226) target = $region44
      $region43: #{tpu_custom_call.1} parent=5 // pred_region
        %s229 = ssub.s32 %s14, 2
        // Predicated region
        $region45: #{tpu_custom_call.1} parent=43 // pred_check
          %p230 = pneg %p95
        $region46: #{tpu_custom_call.1} parent=43 // pred_check_branch
          %232 = sbr.rel (%p230) target = $region48
        $region47: #{tpu_custom_call.1} parent=43 // pred_region
          %p233 = scmp.lt.s32.totalorder %s20, 1
          %s234 = scalar_select %p233, %s20, 1
          %s235 = smul.addr %s234, 4
          %s236 = smul.addr %s235, 8
          %s237 = scalar_lea.vmem %s2, %s236
        $region48: #{tpu_custom_call.1} parent=43 // pred_fallthru
          _
      $region44: #{tpu_custom_call.1} parent=5 // pred_fallthru
        _
    $region6: #{tpu_custom_call.1} parent=1 // loop_footer
      %s18 = sadd.s32 1, %s14
    $region7: #{tpu_custom_call.1} parent=1 // loop_footer_branch
      %13 = sbr.rel target = $region3
    $region8: #{tpu_custom_call.1} parent=1 // loop_exit
      _
    %238 = vsyncpa [#allocation3], 1
    %s239 = scalar_lea.sflag [#allocation3], 1
    %240 = vsyncpa %s239, 1
    %241 = vsyncpa [#allocation5], 1
    %s242 = scalar_lea.sflag [#allocation5], 1
    %243 = vsyncpa %s242, 1

</llo_original>
